<compile_context>
chip_gen: v7x
topology: tpu7x:2x2x1
jax: 0.10.0
libtpu: 0.0.40
codegen_flags: <defaults>
</compile_context>

<pallas_src>
import functools
import math

import jax
import jax.numpy as jnp
from jax.experimental import pallas as pl
from jax.experimental.pallas import tpu as pltpu

_LANE = 128
_MIB = 1024 * 1024

# Lazily probed: does this toolchain lower the in-kernel (tile_n, d_out) ->
# (tile_n*d_out/128, 128) lane-packing reshape?  None = unknown yet.
_PACK_SUPPORTED = None


def _round_up(n, m):
    return ((n + m - 1) // m) * m


def _device_kind():
    try:
        return jax.devices()[0].device_kind.lower()
    except Exception:
        return ""


def _default_config():
    """Generation-aware defaults (v5e: HBM-bound; v6e/v7x: EUP/MXU-push leaning)."""
    kind = _device_kind()
    cfg = dict(tile_n=8192, vmem_limit=40 * _MIB, exp_dtype=jnp.float32,
               x_dtype=jnp.bfloat16, min_steps=1)
    if "v6" in kind:      # v6e: bf16 EUP, 128 MiB VMEM -> big tiles + bf16 exp
        cfg.update(tile_n=16384, vmem_limit=64 * _MIB, exp_dtype=jnp.bfloat16)
    elif "v7" in kind:    # v7x: 64 MiB VMEM, 2 TCs -> cap tile, keep >=4 grid steps
        cfg.update(tile_n=8192, vmem_limit=40 * _MIB, exp_dtype=jnp.bfloat16,
                   min_steps=4)
    elif "v5" in kind:    # v5e/v5p: no bf16 EUP; HBM-bound -> big tiles, f32 exp
        cfg.update(tile_n=16384, vmem_limit=64 * _MIB, exp_dtype=jnp.float32)
    return cfg


def gaussnet_kernel(x_ref, w_in_ref, b_in_ref, w_out_ref, b_out_ref, o_ref, *,
                    d_in, exp_dtype, pack):
    x = x_ref[...]                                        # (tile_n, d_in) bf16

    # Per-row squared norm, accumulated in f32 (XLU reduce; overlaps MXU push).
    x32 = x.astype(jnp.float32)
    nsq = jnp.sum(x32 * x32, axis=1, keepdims=True)       # (tile_n, 1) f32

    # Input Linear on the MXU: bf16 operands, f32 accumulate, f32 bias add.
    z = (
        jnp.dot(x, w_in_ref[...], preferred_element_type=jnp.float32)
        + b_in_ref[...]
    )                                                     # (tile_n, width) f32

    # Fused Gaussian normalizer:
    #   exp(z) / sqrt(exp((4 + 4*nsq) / (2*d_in))) == exp(z - (1 + nsq)/d_in)
    # exp_dtype = bf16 on v6e/v7x (bf16 EUP), f32 on v5e.
    arg = z - (1.0 + nsq) * (1.0 / d_in)
    ezonorm = jnp.exp(arg.astype(exp_dtype))              # (tile_n, width)

    # Output Linear; bf16 operand feeds the MXU directly when exp was bf16.
    out = (
        jnp.dot(ezonorm.astype(w_out_ref.dtype), w_out_ref[...],
                preferred_element_type=jnp.float32)
        + b_out_ref[...]
    )                                                     # (tile_n, d_out) f32

    if pack:
        # Lane-dense store: (tile_n, d_out) -> (tile_n*d_out/128, 128).
        # Row-major reshape == flat packing, undone for free in the wrapper.
        tn, d_out = out.shape
        o_ref[...] = out.reshape(tn * d_out // _LANE, _LANE).astype(o_ref.dtype)
    else:
        o_ref[...] = out.astype(o_ref.dtype)


def _build_call(n_pad, tile_n, d_in, width, d_out, out_dtype, exp_dtype,
                vmem_limit, pack):
    grid = (n_pad // tile_n,)
    if pack:
        out_rows = n_pad * d_out // _LANE
        blk_rows = tile_n * d_out // _LANE
        out_shape = jax.ShapeDtypeStruct((out_rows, _LANE), out_dtype)
        out_spec = pl.BlockSpec((blk_rows, _LANE), lambda i: (i, 0))
    else:
        out_shape = jax.ShapeDtypeStruct((n_pad, d_out), out_dtype)
        out_spec = pl.BlockSpec((tile_n, d_out), lambda i: (i, 0))

    return pl.pallas_call(
        functools.partial(gaussnet_kernel, d_in=d_in, exp_dtype=exp_dtype,
                          pack=pack),
        out_shape=out_shape,
        grid=grid,
        in_specs=[
            pl.BlockSpec((tile_n, d_in), lambda i: (i, 0)),   # x: row-tiled
            pl.BlockSpec((d_in, width), lambda i: (0, 0)),    # W_in^T: resident
            pl.BlockSpec((1, width), lambda i: (0, 0)),       # b_in: resident
            pl.BlockSpec((width, d_out), lambda i: (0, 0)),   # W_out^T: resident
            pl.BlockSpec((1, d_out), lambda i: (0, 0)),       # b_out: resident
        ],
        out_specs=out_spec,
        compiler_params=pltpu.CompilerParams(
            # Row blocks are independent: shards grid steps across both
            # TensorCores on v7x; harmless on single-TC v5e/v6e.
            dimension_semantics=("parallel",),
            vmem_limit_bytes=vmem_limit,
        ),
    )


def gaussnet_forward(x, w_in_t, b_in, w_out_t, b_out, *, tile_n=None,
                     matmul_dtype=jnp.bfloat16, config=None):
    """x: (N, d_in); w_in_t: (d_in, width); b_in: (width,);
    w_out_t: (width, d_out); b_out: (d_out,).  Returns (N, d_out) f32."""
    global _PACK_SUPPORTED

    cfg = dict(_default_config())
    if config:
        cfg.update(config)
    if tile_n is not None:
        cfg["tile_n"] = tile_n

    n, d_in = x.shape
    width = w_in_t.shape[1]
    d_out = w_out_t.shape[1]

    # Ship x as bf16 (halves the dominant HBM read; matmul used bf16 anyway).
    x_m = x.astype(cfg["x_dtype"])
    w_in_m = w_in_t.astype(matmul_dtype)
    w_out_m = w_out_t.astype(matmul_dtype)
    b_in2 = b_in.reshape(1, width).astype(jnp.float32)
    b_out2 = b_out.reshape(1, d_out).astype(jnp.float32)

    # Row tile: multiple of 128 (packing + sublane alignment), shrunk so the
    # grid has >= min_steps steps when n allows it (keeps both v7x TCs busy),
    # and capped at the rounded-up batch size.
    tile = cfg["tile_n"]
    min_steps = cfg.get("min_steps", 1)
    if min_steps > 1:
        tile = min(tile, _round_up(pl.cdiv(n, min_steps), _LANE))
    tile = max(_LANE, min(_round_up(tile, _LANE), _round_up(n, _LANE)))
    n_pad = _round_up(n, tile)
    if n_pad != n:
        # Zero rows -> finite garbage output, sliced off below.
        x_m = jnp.pad(x_m, ((0, n_pad - n), (0, 0)))

    args = (x_m, w_in_m, b_in2, w_out_m, b_out2)
    common = dict(n_pad=n_pad, tile_n=tile, d_in=d_in, width=width, d_out=d_out,
                  out_dtype=jnp.float32, exp_dtype=cfg["exp_dtype"],
                  vmem_limit=cfg["vmem_limit"])

    pack_ok = (d_out < _LANE) and (tile * d_out) % _LANE == 0
    out = None
    if pack_ok and _PACK_SUPPORTED is not False:
        try:
            out_packed = _build_call(pack=True, **common)(*args)
            jax.block_until_ready(out_packed)  # surface any lowering/compile error here
            out = out_packed.reshape(n_pad, d_out)  # free: contiguous row-major
            _PACK_SUPPORTED = True
        except Exception:
            _PACK_SUPPORTED = False
            out = None
    if out is None:
        out = _build_call(pack=False, **common)(*args)

    return out[:n] if n_pad != n else out


def gaussnet_ref(x, w_in_t, b_in, w_out_t, b_out, *, x_dtype=jnp.float32,
                 matmul_dtype=jnp.float32, exp_dtype=jnp.float32):
    """Pure-JAX reference using the original (un-fused) PyTorch formulation."""
    d_in = x.shape[1]
    xm = x.astype(x_dtype).astype(jnp.float32)
    z = (jnp.dot(xm.astype(matmul_dtype), w_in_t.astype(matmul_dtype),
                 preferred_element_type=jnp.float32) + b_in)
    ez = jnp.exp(z.astype(exp_dtype)).astype(jnp.float32)
    nsq = jnp.sum(xm * xm, axis=1, keepdims=True)
    norm = jnp.sqrt(jnp.exp((4.0 + 4.0 * nsq) / (2.0 * d_in)))
    ezonorm = ez / norm
    return (jnp.dot(ezonorm.astype(matmul_dtype), w_out_t.astype(matmul_dtype),
                    preferred_element_type=jnp.float32) + b_out)


if __name__ == "__main__":
    # "args" hyper-parameters (deterministic, synthetic).
    d_in, width, d_out = 32, 128, 8
    mw, sw, mb, sb = 0.0, 1.0, 0.0, 0.5

    key = jax.random.PRNGKey(0)
    k_x, k_wi, k_bi, k_wo, k_bo, k_x2 = jax.random.split(key, 6)

    # PyTorch stores Linear weight as (out, in); init per GaussNet.__init__,
    # then transpose to (in, out) for the kernel's row-major matmul layout.
    w_in = mw + (sw / math.sqrt(d_in)) * jax.random.normal(k_wi, (width, d_in), jnp.float32)
    b_in = mb + sb * jax.random.normal(k_bi, (width,), jnp.float32)
    w_out = mw + (sw / math.sqrt(width)) * jax.random.normal(k_wo, (d_out, width), jnp.float32)
    b_out = mb + sb * jax.random.normal(k_bo, (d_out,), jnp.float32)
    w_in_t, w_out_t = w_in.T, w_out.T

    cfg = _default_config()

    def check(x, tile_n=None):
        out = jax.block_until_ready(
            gaussnet_forward(x, w_in_t, b_in, w_out_t, b_out, tile_n=tile_n))
        assert out.shape == (x.shape[0], d_out)
        assert out.dtype == jnp.float32
        # Matching-precision reference (bf16 x, bf16 matmul operands, same exp dtype).
        ref_m = gaussnet_ref(x, w_in_t, b_in, w_out_t, b_out,
                             x_dtype=cfg["x_dtype"], matmul_dtype=jnp.bfloat16,
                             exp_dtype=cfg["exp_dtype"])
        assert jnp.allclose(out, ref_m, atol=3e-2, rtol=3e-2), "mismatch vs matched ref"
        # Full-f32 reference: loose tolerance absorbs bf16 operands / bf16 exp.
        ref_f32 = gaussnet_ref(x, w_in_t, b_in, w_out_t, b_out)
        assert jnp.allclose(out, ref_f32, atol=2e-1, rtol=1e-1), "mismatch vs f32 ref"

    # Small-batch test (single grid step; also probes the lane-packed output path).
    x_small = jax.random.normal(k_x, (8, d_in), dtype=jnp.float32)
    check(x_small)

    # Larger batch with generation-default tiling.
    x_big = jax.random.normal(k_x2, (1000, d_in), dtype=jnp.float32)
    check(x_big)

    # Ragged, multi-step-grid test (exercises row tiling, padding, weight residency).
    check(x_big, tile_n=256)

    print("KERNEL_OK")
</pallas_src>

<mosaic_0001>
module attributes {stable_mosaic.version = 11 : i64} {
  func.func @gaussnet_kernel(%arg0: i32, %arg1: memref<128x32xbf16, #tpu.memory_space<vmem>>, %arg2: memref<32x128xbf16, #tpu.memory_space<vmem>>, %arg3: memref<1x128xf32, #tpu.memory_space<vmem>>, %arg4: memref<128x8xbf16, #tpu.memory_space<vmem>>, %arg5: memref<1x8xf32, #tpu.memory_space<vmem>>, %arg6: memref<8x128xf32, #tpu.memory_space<vmem>>) attributes {dimension_semantics = [#tpu.dimension_semantics<parallel>], iteration_bounds = array<i64: 1>, scalar_prefetch = 0 : i64, scratch_operands = 0 : i64, tpu.core_type = #tpu.core_type<tc>, window_params = [{transform_indices = @transform_0, window_bounds = array<i64: 128, 32>}, {pipeline_mode = #tpu.pipeline_mode<synchronous>, transform_indices = @transform_1, window_bounds = array<i64: 32, 128>}, {pipeline_mode = #tpu.pipeline_mode<synchronous>, transform_indices = @transform_2, window_bounds = array<i64: 1, 128>}, {pipeline_mode = #tpu.pipeline_mode<synchronous>, transform_indices = @transform_3, window_bounds = array<i64: 128, 8>}, {pipeline_mode = #tpu.pipeline_mode<synchronous>, transform_indices = @transform_4, window_bounds = array<i64: 1, 8>}, {transform_indices = @transform_5, window_bounds = array<i64: 8, 128>}]} {
    %c0 = arith.constant 0 : index
    %c0_0 = arith.constant 0 : index
    %0 = vector.load %arg1[%c0, %c0_0] : memref<128x32xbf16, #tpu.memory_space<vmem>>, vector<128x32xbf16>
    %1 = arith.extf %0 : vector<128x32xbf16> to vector<128x32xf32>
    %2 = arith.mulf %1, %1 : vector<128x32xf32>
    %cst = arith.constant dense<0.000000e+00> : vector<128xf32>
    %3 = vector.multi_reduction <add>, %2, %cst [1] : vector<128x32xf32> to vector<128xf32>
    %4 = vector.shape_cast %3 : vector<128xf32> to vector<128x1xf32>
    %c0_1 = arith.constant 0 : index
    %c0_2 = arith.constant 0 : index
    %5 = vector.load %arg2[%c0_1, %c0_2] : memref<32x128xbf16, #tpu.memory_space<vmem>>, vector<32x128xbf16>
    %cst_3 = arith.constant dense<0.000000e+00> : vector<128x128xf32>
    %6 = tpu.matmul %0, %5, %cst_3 {dimension_numbers = #tpu.dot_dimension_numbers<[1], [0], [0], [1], [0, 0, 1, 1], [], []>} : vector<128x32xbf16>, vector<32x128xbf16>, vector<128x128xf32> -> vector<128x128xf32>
    %c0_4 = arith.constant 0 : index
    %c0_5 = arith.constant 0 : index
    %7 = vector.load %arg3[%c0_4, %c0_5] : memref<1x128xf32, #tpu.memory_space<vmem>>, vector<1x128xf32>
    %8 = vector.broadcast %7 : vector<1x128xf32> to vector<128x128xf32>
    %9 = arith.addf %6, %8 : vector<128x128xf32>
    %cst_6 = arith.constant 1.000000e+00 : f32
    %10 = vector.broadcast %cst_6 : f32 to vector<128x1xf32>
    %11 = arith.addf %10, %4 : vector<128x1xf32>
    %cst_7 = arith.constant 3.125000e-02 : f32
    %12 = vector.broadcast %cst_7 : f32 to vector<128x1xf32>
    %13 = arith.mulf %11, %12 : vector<128x1xf32>
    %14 = vector.broadcast %13 : vector<128x1xf32> to vector<128x128xf32>
    %15 = arith.subf %9, %14 : vector<128x128xf32>
    %16 = math.exp %15 : vector<128x128xf32>
    %17 = arith.truncf %16 : vector<128x128xf32> to vector<128x128xbf16>
    %c0_8 = arith.constant 0 : index
    %c0_9 = arith.constant 0 : index
    %18 = vector.load %arg4[%c0_8, %c0_9] : memref<128x8xbf16, #tpu.memory_space<vmem>>, vector<128x8xbf16>
    %cst_10 = arith.constant dense<0.000000e+00> : vector<128x8xf32>
    %19 = tpu.matmul %17, %18, %cst_10 {dimension_numbers = #tpu.dot_dimension_numbers<[1], [0], [0], [1], [0, 0, 1, 1], [], []>} : vector<128x128xbf16>, vector<128x8xbf16>, vector<128x8xf32> -> vector<128x8xf32>
    %c0_11 = arith.constant 0 : index
    %c0_12 = arith.constant 0 : index
    %20 = vector.load %arg5[%c0_11, %c0_12] : memref<1x8xf32, #tpu.memory_space<vmem>>, vector<1x8xf32>
    %21 = vector.broadcast %20 : vector<1x8xf32> to vector<128x8xf32>
    %22 = arith.addf %19, %21 : vector<128x8xf32>
    %23 = vector.shape_cast %22 : vector<128x8xf32> to vector<8x128xf32>
    %c0_13 = arith.constant 0 : index
    %c0_14 = arith.constant 0 : index
    %24 = vector.load %arg6[%c0_13, %c0_14] : memref<8x128xf32, #tpu.memory_space<vmem>>, vector<8x128xf32>
    tpu.vector_store %arg6[%c0_13, %c0_14], %23 {strides = array<i32>} : memref<8x128xf32, #tpu.memory_space<vmem>>, vector<8x128xf32>,
    return
  }
  func.func @transform_0(%arg0: i32) -> (i32, i32) {
    %c0_i32 = arith.constant 0 : i32
    %c0_i32_0 = arith.constant 0 : i32
    return %arg0, %c0_i32 : i32, i32
  }
  func.func @transform_1(%arg0: i32) -> (i32, i32) {
    %c0_i32 = arith.constant 0 : i32
    %c0_i32_0 = arith.constant 0 : i32
    %c0_i32_1 = arith.constant 0 : i32
    return %c0_i32, %c0_i32_0 : i32, i32
  }
  func.func @transform_2(%arg0: i32) -> (i32, i32) {
    %c0_i32 = arith.constant 0 : i32
    %c0_i32_0 = arith.constant 0 : i32
    %c0_i32_1 = arith.constant 0 : i32
    return %c0_i32, %c0_i32_0 : i32, i32
  }
  func.func @transform_3(%arg0: i32) -> (i32, i32) {
    %c0_i32 = arith.constant 0 : i32
    %c0_i32_0 = arith.constant 0 : i32
    %c0_i32_1 = arith.constant 0 : i32
    return %c0_i32, %c0_i32_0 : i32, i32
  }
  func.func @transform_4(%arg0: i32) -> (i32, i32) {
    %c0_i32 = arith.constant 0 : i32
    %c0_i32_0 = arith.constant 0 : i32
    %c0_i32_1 = arith.constant 0 : i32
    return %c0_i32, %c0_i32_0 : i32, i32
  }
  func.func @transform_5(%arg0: i32) -> (i32, i32) {
    %c0_i32 = arith.constant 0 : i32
    %c0_i32_0 = arith.constant 0 : i32
    return %arg0, %c0_i32 : i32, i32
  }
}

module attributes {stable_mosaic.version = 11 : i64} {
  func.func @gaussnet_kernel(%arg0: i32, %arg1: memref<128x32xbf16, #tpu.memory_space<vmem>>, %arg2: memref<32x128xbf16, #tpu.memory_space<vmem>>, %arg3: memref<1x128xf32, #tpu.memory_space<vmem>>, %arg4: memref<128x8xbf16, #tpu.memory_space<vmem>>, %arg5: memref<1x8xf32, #tpu.memory_space<vmem>>, %arg6: memref<128x8xf32, #tpu.memory_space<vmem>>) attributes {dimension_semantics = [#tpu.dimension_semantics<parallel>], iteration_bounds = array<i64: 1>, scalar_prefetch = 0 : i64, scratch_operands = 0 : i64, tpu.core_type = #tpu.core_type<tc>, window_params = [{transform_indices = @transform_0, window_bounds = array<i64: 128, 32>}, {pipeline_mode = #tpu.pipeline_mode<synchronous>, transform_indices = @transform_1, window_bounds = array<i64: 32, 128>}, {pipeline_mode = #tpu.pipeline_mode<synchronous>, transform_indices = @transform_2, window_bounds = array<i64: 1, 128>}, {pipeline_mode = #tpu.pipeline_mode<synchronous>, transform_indices = @transform_3, window_bounds = array<i64: 128, 8>}, {pipeline_mode = #tpu.pipeline_mode<synchronous>, transform_indices = @transform_4, window_bounds = array<i64: 1, 8>}, {transform_indices = @transform_5, window_bounds = array<i64: 128, 8>}]} {
    %c0 = arith.constant 0 : index
    %c0_0 = arith.constant 0 : index
    %0 = vector.load %arg1[%c0, %c0_0] : memref<128x32xbf16, #tpu.memory_space<vmem>>, vector<128x32xbf16>
    %1 = arith.extf %0 : vector<128x32xbf16> to vector<128x32xf32>
    %2 = arith.mulf %1, %1 : vector<128x32xf32>
    %cst = arith.constant dense<0.000000e+00> : vector<128xf32>
    %3 = vector.multi_reduction <add>, %2, %cst [1] : vector<128x32xf32> to vector<128xf32>
    %4 = vector.shape_cast %3 : vector<128xf32> to vector<128x1xf32>
    %c0_1 = arith.constant 0 : index
    %c0_2 = arith.constant 0 : index
    %5 = vector.load %arg2[%c0_1, %c0_2] : memref<32x128xbf16, #tpu.memory_space<vmem>>, vector<32x128xbf16>
    %cst_3 = arith.constant dense<0.000000e+00> : vector<128x128xf32>
    %6 = tpu.matmul %0, %5, %cst_3 {dimension_numbers = #tpu.dot_dimension_numbers<[1], [0], [0], [1], [0, 0, 1, 1], [], []>} : vector<128x32xbf16>, vector<32x128xbf16>, vector<128x128xf32> -> vector<128x128xf32>
    %c0_4 = arith.constant 0 : index
    %c0_5 = arith.constant 0 : index
    %7 = vector.load %arg3[%c0_4, %c0_5] : memref<1x128xf32, #tpu.memory_space<vmem>>, vector<1x128xf32>
    %8 = vector.broadcast %7 : vector<1x128xf32> to vector<128x128xf32>
    %9 = arith.addf %6, %8 : vector<128x128xf32>
    %cst_6 = arith.constant 1.000000e+00 : f32
    %10 = vector.broadcast %cst_6 : f32 to vector<128x1xf32>
    %11 = arith.addf %10, %4 : vector<128x1xf32>
    %cst_7 = arith.constant 3.125000e-02 : f32
    %12 = vector.broadcast %cst_7 : f32 to vector<128x1xf32>
    %13 = arith.mulf %11, %12 : vector<128x1xf32>
    %14 = vector.broadcast %13 : vector<128x1xf32> to vector<128x128xf32>
    %15 = arith.subf %9, %14 : vector<128x128xf32>
    %16 = math.exp %15 : vector<128x128xf32>
    %17 = arith.truncf %16 : vector<128x128xf32> to vector<128x128xbf16>
    %c0_8 = arith.constant 0 : index
    %c0_9 = arith.constant 0 : index
    %18 = vector.load %arg4[%c0_8, %c0_9] : memref<128x8xbf16, #tpu.memory_space<vmem>>, vector<128x8xbf16>
    %cst_10 = arith.constant dense<0.000000e+00> : vector<128x8xf32>
    %19 = tpu.matmul %17, %18, %cst_10 {dimension_numbers = #tpu.dot_dimension_numbers<[1], [0], [0], [1], [0, 0, 1, 1], [], []>} : vector<128x128xbf16>, vector<128x8xbf16>, vector<128x8xf32> -> vector<128x8xf32>
    %c0_11 = arith.constant 0 : index
    %c0_12 = arith.constant 0 : index
    %20 = vector.load %arg5[%c0_11, %c0_12] : memref<1x8xf32, #tpu.memory_space<vmem>>, vector<1x8xf32>
    %21 = vector.broadcast %20 : vector<1x8xf32> to vector<128x8xf32>
    %22 = arith.addf %19, %21 : vector<128x8xf32>
    %c0_13 = arith.constant 0 : index
    %c0_14 = arith.constant 0 : index
    %23 = vector.load %arg6[%c0_13, %c0_14] : memref<128x8xf32, #tpu.memory_space<vmem>>, vector<128x8xf32>
    tpu.vector_store %arg6[%c0_13, %c0_14], %22 {strides = array<i32>} : memref<128x8xf32, #tpu.memory_space<vmem>>, vector<128x8xf32>,
    return
  }
  func.func @transform_0(%arg0: i32) -> (i32, i32) {
    %c0_i32 = arith.constant 0 : i32
    %c0_i32_0 = arith.constant 0 : i32
    return %arg0, %c0_i32 : i32, i32
  }
  func.func @transform_1(%arg0: i32) -> (i32, i32) {
    %c0_i32 = arith.constant 0 : i32
    %c0_i32_0 = arith.constant 0 : i32
    %c0_i32_1 = arith.constant 0 : i32
    return %c0_i32, %c0_i32_0 : i32, i32
  }
  func.func @transform_2(%arg0: i32) -> (i32, i32) {
    %c0_i32 = arith.constant 0 : i32
    %c0_i32_0 = arith.constant 0 : i32
    %c0_i32_1 = arith.constant 0 : i32
    return %c0_i32, %c0_i32_0 : i32, i32
  }
  func.func @transform_3(%arg0: i32) -> (i32, i32) {
    %c0_i32 = arith.constant 0 : i32
    %c0_i32_0 = arith.constant 0 : i32
    %c0_i32_1 = arith.constant 0 : i32
    return %c0_i32, %c0_i32_0 : i32, i32
  }
  func.func @transform_4(%arg0: i32) -> (i32, i32) {
    %c0_i32 = arith.constant 0 : i32
    %c0_i32_0 = arith.constant 0 : i32
    %c0_i32_1 = arith.constant 0 : i32
    return %c0_i32, %c0_i32_0 : i32, i32
  }
  func.func @transform_5(%arg0: i32) -> (i32, i32) {
    %c0_i32 = arith.constant 0 : i32
    %c0_i32_0 = arith.constant 0 : i32
    return %arg0, %c0_i32 : i32, i32
  }
}

</mosaic_0001>

<llo_original>
// kernel: tpu_custom_call.1
$region0: #{tpu_custom_call.1}
  #allocation0 [shape = 'u32[]', space=smem, size = 0x4, offset = 0x4, fixed_abs, tag = 'smem constant byte address 0x4 - core index']
  #allocation1 [shape = 'u32[144,128]{1,0:T(1,128)}', space=vmem, size = 0x12000, scoped, tag = 'internal scratch']
  %s0 = inlined_call_operand.vmem [shape: bf16[128,32], index: 0, kind: input, shape index: {}]
  %s1 = inlined_call_operand.vmem [shape: bf16[32,128], index: 1, kind: input, shape index: {}]
  %s2 = inlined_call_operand.vmem [shape: f32[1,128], index: 2, kind: input, shape index: {}]
  %s3 = inlined_call_operand.vmem [shape: bf16[128,8], index: 3, kind: input, shape index: {}]
  %s4 = inlined_call_operand.vmem [shape: f32[1,8], index: 4, kind: input, shape index: {}]
  %s5 = inlined_call_operand.vmem [shape: f32[128,8], index: 5, kind: output, shape index: {}]
  %s6 = sld [smem:[#allocation0]]
  $region30: #{tpu_custom_call.1} parent=0
    _
  %s8 = ssub.s32 1, %s6
  %s9 = scalar_select 0, %s8, %s6
  // Predicated region
  $region2: #{tpu_custom_call.1} parent=0 // pred_check
    _
  $region3: #{tpu_custom_call.1} parent=0 // pred_check_branch
    %11 = sbr.rel (0) target = $region5
  $region4: #{tpu_custom_call.1} parent=0 // pred_region
    _
  $region5: #{tpu_custom_call.1} parent=0 // pred_fallthru
    _
  // Predicated region
  $region6: #{tpu_custom_call.1} parent=0 // pred_check
    _
  $region7: #{tpu_custom_call.1} parent=0 // pred_check_branch
    %13 = sbr.rel (0) target = $region9
  $region8: #{tpu_custom_call.1} parent=0 // pred_region
    _
  $region9: #{tpu_custom_call.1} parent=0 // pred_fallthru
    _
  // Predicated region
  $region10: #{tpu_custom_call.1} parent=0 // pred_check
    _
  $region11: #{tpu_custom_call.1} parent=0 // pred_check_branch
    %15 = sbr.rel (0) target = $region13
  $region12: #{tpu_custom_call.1} parent=0 // pred_region
    _
  $region13: #{tpu_custom_call.1} parent=0 // pred_fallthru
    _
  // Predicated region
  $region14: #{tpu_custom_call.1} parent=0 // pred_check
    _
  $region15: #{tpu_custom_call.1} parent=0 // pred_check_branch
    %17 = sbr.rel (0) target = $region17
  $region16: #{tpu_custom_call.1} parent=0 // pred_region
    _
  $region17: #{tpu_custom_call.1} parent=0 // pred_fallthru
    _
  // Predicated region
  $region18: #{tpu_custom_call.1} parent=0 // pred_check
    _
  $region19: #{tpu_custom_call.1} parent=0 // pred_check_branch
    %19 = sbr.rel (0) target = $region21
  $region20: #{tpu_custom_call.1} parent=0 // pred_region
    _
  $region21: #{tpu_custom_call.1} parent=0 // pred_fallthru
    _
  %v21 = vld [vmem:[%s0] sm:$0xf]
  %v22 = vld [vmem:[%s0 + $0x4] sm:$0xf]
  %v23 = vld [vmem:[%s0 + $0x8] sm:$0xf]
  %v24 = vld [vmem:[%s0 + $0xc] sm:$0xf]
  %v25 = vld [vmem:[%s0 + $0x10] sm:$0xf]
  %v26 = vld [vmem:[%s0 + $0x14] sm:$0xf]
  %v27 = vld [vmem:[%s0 + $0x18] sm:$0xf]
  %v28 = vld [vmem:[%s0 + $0x1c] sm:$0xf]
  %v29 = vld [vmem:[%s0 + $0x20] sm:$0xf]
  %v30 = vld [vmem:[%s0 + $0x24] sm:$0xf]
  %v31 = vld [vmem:[%s0 + $0x28] sm:$0xf]
  %v32 = vld [vmem:[%s0 + $0x2c] sm:$0xf]
  %v33 = vld [vmem:[%s0 + $0x30] sm:$0xf]
  %v34 = vld [vmem:[%s0 + $0x34] sm:$0xf]
  %v35 = vld [vmem:[%s0 + $0x38] sm:$0xf]
  %v36 = vld [vmem:[%s0 + $0x3c] sm:$0xf]
  %v37 = vunpack.c.l.bf16 %v21
  %v38 = vunpack.c.l.bf16 %v22
  %v39 = vunpack.c.l.bf16 %v23
  %v40 = vunpack.c.l.bf16 %v24
  %v41 = vunpack.c.l.bf16 %v25
  %v42 = vunpack.c.l.bf16 %v26
  %v43 = vunpack.c.l.bf16 %v27
  %v44 = vunpack.c.l.bf16 %v28
  %v45 = vunpack.c.l.bf16 %v29
  %v46 = vunpack.c.l.bf16 %v30
  %v47 = vunpack.c.l.bf16 %v31
  %v48 = vunpack.c.l.bf16 %v32
  %v49 = vunpack.c.l.bf16 %v33
  %v50 = vunpack.c.l.bf16 %v34
  %v51 = vunpack.c.l.bf16 %v35
  %v52 = vunpack.c.l.bf16 %v36
  %v53 = vmul.f32 %v37, %v37
  %v54 = vmul.f32 %v38, %v38
  %v55 = vmul.f32 %v39, %v39
  %v56 = vmul.f32 %v40, %v40
  %v57 = vmul.f32 %v41, %v41
  %v58 = vmul.f32 %v42, %v42
  %v59 = vmul.f32 %v43, %v43
  %v60 = vmul.f32 %v44, %v44
  %v61 = vmul.f32 %v45, %v45
  %v62 = vmul.f32 %v46, %v46
  %v63 = vmul.f32 %v47, %v47
  %v64 = vmul.f32 %v48, %v48
  %v65 = vmul.f32 %v49, %v49
  %v66 = vmul.f32 %v50, %v50
  %v67 = vmul.f32 %v51, %v51
  %v68 = vmul.f32 %v52, %v52
  %vm69 = vcmask 261120
  %v70 = vsel %vm69, %v53, 0.0
  %71 = vadd.xlane.f32.xlu0 %v70
  %v72 = vpop.xlane.xlu0 %71
  %v73 = vsel %vm69, %v54, 0.0
  %74 = vadd.xlane.f32.xlu0 %v73
  %v75 = vpop.xlane.xlu0 %74
  %v76 = vsel %vm69, %v55, 0.0
  %77 = vadd.xlane.f32.xlu0 %v76
  %v78 = vpop.xlane.xlu0 %77
  %v79 = vsel %vm69, %v56, 0.0
  %80 = vadd.xlane.f32.xlu0 %v79
  %v81 = vpop.xlane.xlu0 %80
  %v82 = vsel %vm69, %v57, 0.0
  %83 = vadd.xlane.f32.xlu0 %v82
  %v84 = vpop.xlane.xlu0 %83
  %v85 = vsel %vm69, %v58, 0.0
  %86 = vadd.xlane.f32.xlu0 %v85
  %v87 = vpop.xlane.xlu0 %86
  %v88 = vsel %vm69, %v59, 0.0
  %89 = vadd.xlane.f32.xlu0 %v88
  %v90 = vpop.xlane.xlu0 %89
  %v91 = vsel %vm69, %v60, 0.0
  %92 = vadd.xlane.f32.xlu0 %v91
  %v93 = vpop.xlane.xlu0 %92
  %v94 = vsel %vm69, %v61, 0.0
  %95 = vadd.xlane.f32.xlu0 %v94
  %v96 = vpop.xlane.xlu0 %95
  %v97 = vsel %vm69, %v62, 0.0
  %98 = vadd.xlane.f32.xlu0 %v97
  %v99 = vpop.xlane.xlu0 %98
  %v100 = vsel %vm69, %v63, 0.0
  %101 = vadd.xlane.f32.xlu0 %v100
  %v102 = vpop.xlane.xlu0 %101
  %v103 = vsel %vm69, %v64, 0.0
  %104 = vadd.xlane.f32.xlu0 %v103
  %v105 = vpop.xlane.xlu0 %104
  %v106 = vsel %vm69, %v65, 0.0
  %107 = vadd.xlane.f32.xlu0 %v106
  %v108 = vpop.xlane.xlu0 %107
  %v109 = vsel %vm69, %v66, 0.0
  %110 = vadd.xlane.f32.xlu0 %v109
  %v111 = vpop.xlane.xlu0 %110
  %v112 = vsel %vm69, %v67, 0.0
  %113 = vadd.xlane.f32.xlu0 %v112
  %v114 = vpop.xlane.xlu0 %113
  %v115 = vsel %vm69, %v68, 0.0
  %116 = vadd.xlane.f32.xlu0 %v115
  %v117 = vpop.xlane.xlu0 %116
  %v118 = vld [vmem:[%s1] sm:$0xf]
  %v119 = vld [vmem:[%s1 + $0x4] sm:$0xf]
  %v120 = vld [vmem:[%s1 + $0x8] sm:$0xf]
  %v121 = vld [vmem:[%s1 + $0xc] sm:$0xf]
  %v122 = vld [vmem:[%s2] sm:$0x1]
  %v124 = vlaneseq
  %v125 = vshrl.u32 %v124, 7
  %v126 = vsub.s32 0, %v125
  %v127 = vrot.slane %v122, %v126
  %v145 = vunpack.c.l.b16 %v21
  %v146 = vunpack.c.l.b16 %v22
  %v147 = vunpack.c.l.b16 %v23
  %v148 = vunpack.c.l.b16 %v24
  %v149 = vunpack.c.l.b16 %v25
  %v150 = vunpack.c.l.b16 %v26
  %v151 = vunpack.c.l.b16 %v27
  %v152 = vunpack.c.l.b16 %v28
  %v153 = vunpack.c.l.b16 %v29
  %v154 = vunpack.c.l.b16 %v30
  %v155 = vunpack.c.l.b16 %v31
  %v156 = vunpack.c.l.b16 %v32
  %v157 = vunpack.c.l.b16 %v33
  %v158 = vunpack.c.l.b16 %v34
  %v159 = vunpack.c.l.b16 %v35
  %v160 = vunpack.c.l.b16 %v36
  %v161 = vpack.c.b16 %v146, %v145
  %v162 = vpack.c.b16 %v148, %v147
  %v163 = vpack.c.b16 %v150, %v149
  %v164 = vpack.c.b16 %v152, %v151
  %v165 = vpack.c.b16 %v154, %v153
  %v166 = vpack.c.b16 %v156, %v155
  %v167 = vpack.c.b16 %v158, %v157
  %v168 = vpack.c.b16 %v160, %v159
  %v173 = vunpack.c.l.b16 %v118
  %v174 = vunpack.c.l.b16 %v119
  %v175 = vunpack.c.l.b16 %v120
  %v176 = vunpack.c.l.b16 %v121
  %v177 = vpack.c.b16 %v174, %v173
  %v178 = vpack.c.b16 %v176, %v175
  %v182 = vsel %vm69, %v161, 0
  %v185 = vsel %vm69, %v162, 0
  %v188 = vsel %vm69, %v163, 0
  %v191 = vsel %vm69, %v164, 0
  %v194 = vsel %vm69, %v165, 0
  %v197 = vsel %vm69, %v166, 0
  %v200 = vsel %vm69, %v167, 0
  %v203 = vsel %vm69, %v168, 0
  %205 = vmatprep.subr.bf16.mxu0 0
  %206 = vmatpush1.bf16.msra.mxu0 %v177
  %207 = vmatprep.subr.bf16.mxu0 0
  %208 = vmatpush1.bf16.msra.mxu0 %v178
  %209 = vmatprep.subr.bf16.mxu0 0
  %210 = vmatpush1.bf16.msra.mxu0 0
  %211 = vmatprep.subr.bf16.mxu0 0
  %212 = vmatpush1.bf16.msra.mxu0 0
  %213 = vmatprep.subr.bf16.mxu0 0
  %214 = vmatpush1.bf16.msra.mxu0 0
  %215 = vmatprep.subr.bf16.mxu0 0
  %216 = vmatpush1.bf16.msra.mxu0 0
  %217 = vmatprep.subr.bf16.mxu0 0
  %218 = vmatpush1.bf16.msra.mxu0 0
  %219 = vmatprep.subr.bf16.mxu0 0
  %220 = vmatpush1.bf16.msra.mxu0 0
  %221 = vmatprep.subr.bf16.mxu0 0
  %222 = vmatpush1.bf16.msra.mxu0 0
  %223 = vmatprep.subr.bf16.mxu0 0
  %224 = vmatpush1.bf16.msra.mxu0 0
  %225 = vmatprep.subr.bf16.mxu0 0
  %226 = vmatpush1.bf16.msra.mxu0 0
  %227 = vmatprep.subr.bf16.mxu0 0
  %228 = vmatpush1.bf16.msra.mxu0 0
  %229 = vmatprep.subr.bf16.mxu0 0
  %230 = vmatpush1.bf16.msra.mxu0 0
  %231 = vmatprep.subr.bf16.mxu0 0
  %232 = vmatpush1.bf16.msra.mxu0 0
  %233 = vmatprep.subr.bf16.mxu0 0
  %234 = vmatpush1.bf16.msra.mxu0 0
  %235 = vmatprep.subr.bf16.mxu0 0
  %236 = vmatpush1.bf16.msra.mxu0 0
  %237 = vmatprep.mubr.bf16.mxu0 0
  %238 = vmatmul.mubr.bf16.gmra.mrb[0].mxu0 %v182
  %v239 = vpop.f32.mrb[0].mxu0
  %v240 = vadd.f32 %v127, %v239
  %v241 = vpop.f32.mrb[0].mxu0
  %v242 = vpop.f32.mrb[0].mxu0
  %v243 = vadd.f32 %v127, %v242
  %v244 = vpop.f32.mrb[0].mxu0
  %245 = vmatprep.mubr.bf16.mxu0 0
  %246 = vmatmul.mubr.bf16.gmra.mrb[0].mxu0 %v185
  %v247 = vpop.f32.mrb[0].mxu0
  %v248 = vadd.f32 %v127, %v247
  %v249 = vpop.f32.mrb[0].mxu0
  %v250 = vpop.f32.mrb[0].mxu0
  %v251 = vadd.f32 %v127, %v250
  %v252 = vpop.f32.mrb[0].mxu0
  %253 = vmatprep.mubr.bf16.mxu0 0
  %254 = vmatmul.mubr.bf16.gmra.mrb[0].mxu0 %v188
  %v255 = vpop.f32.mrb[0].mxu0
  %v256 = vadd.f32 %v127, %v255
  %v257 = vpop.f32.mrb[0].mxu0
  %v258 = vpop.f32.mrb[0].mxu0
  %v259 = vadd.f32 %v127, %v258
  %v260 = vpop.f32.mrb[0].mxu0
  %261 = vmatprep.mubr.bf16.mxu0 0
  %262 = vmatmul.mubr.bf16.gmra.mrb[0].mxu0 %v191
  %v263 = vpop.f32.mrb[0].mxu0
  %v264 = vadd.f32 %v127, %v263
  %v265 = vpop.f32.mrb[0].mxu0
  %v266 = vpop.f32.mrb[0].mxu0
  %v267 = vadd.f32 %v127, %v266
  %v268 = vpop.f32.mrb[0].mxu0
  %269 = vmatprep.mubr.bf16.mxu0 0
  %270 = vmatmul.mubr.bf16.gmra.mrb[0].mxu0 %v194
  %v271 = vpop.f32.mrb[0].mxu0
  %v272 = vadd.f32 %v127, %v271
  %v273 = vpop.f32.mrb[0].mxu0
  %v274 = vpop.f32.mrb[0].mxu0
  %v275 = vadd.f32 %v127, %v274
  %v276 = vpop.f32.mrb[0].mxu0
  %277 = vmatprep.mubr.bf16.mxu0 0
  %278 = vmatmul.mubr.bf16.gmra.mrb[0].mxu0 %v197
  %v279 = vpop.f32.mrb[0].mxu0
  %v280 = vadd.f32 %v127, %v279
  %v281 = vpop.f32.mrb[0].mxu0
  %v282 = vpop.f32.mrb[0].mxu0
  %v283 = vadd.f32 %v127, %v282
  %v284 = vpop.f32.mrb[0].mxu0
  %285 = vmatprep.mubr.bf16.mxu0 0
  %286 = vmatmul.mubr.bf16.gmra.mrb[0].mxu0 %v200
  %v287 = vpop.f32.mrb[0].mxu0
  %v288 = vadd.f32 %v127, %v287
  %v289 = vpop.f32.mrb[0].mxu0
  %v290 = vpop.f32.mrb[0].mxu0
  %v291 = vadd.f32 %v127, %v290
  %v292 = vpop.f32.mrb[0].mxu0
  %293 = vmatprep.mubr.bf16.mxu0 0
  %294 = vmatmul.mubr.bf16.gmra.mrb[0].mxu0 %v203
  %v295 = vpop.f32.mrb[0].mxu0
  %v296 = vadd.f32 %v127, %v295
  %v297 = vpop.f32.mrb[0].mxu0
  %v298 = vpop.f32.mrb[0].mxu0
  %v299 = vadd.f32 %v127, %v298
  %v300 = vpop.f32.mrb[0].mxu0
  %301 = vdwg.mxu0
  %v302 = vadd.f32 %v72, 1.0
  %v303 = vadd.f32 %v75, 1.0
  %v304 = vadd.f32 %v78, 1.0
  %v305 = vadd.f32 %v81, 1.0
  %v306 = vadd.f32 %v84, 1.0
  %v307 = vadd.f32 %v87, 1.0
  %v308 = vadd.f32 %v90, 1.0
  %v309 = vadd.f32 %v93, 1.0
  %v310 = vadd.f32 %v96, 1.0
  %v311 = vadd.f32 %v99, 1.0
  %v312 = vadd.f32 %v102, 1.0
  %v313 = vadd.f32 %v105, 1.0
  %v314 = vadd.f32 %v108, 1.0
  %v315 = vadd.f32 %v111, 1.0
  %v316 = vadd.f32 %v114, 1.0
  %v317 = vadd.f32 %v117, 1.0
  %v318 = vmul.f32 %v302, 0.03125
  %v319 = vmul.f32 %v303, 0.03125
  %v320 = vmul.f32 %v304, 0.03125
  %v321 = vmul.f32 %v305, 0.03125
  %v322 = vmul.f32 %v306, 0.03125
  %v323 = vmul.f32 %v307, 0.03125
  %v324 = vmul.f32 %v308, 0.03125
  %v325 = vmul.f32 %v309, 0.03125
  %v326 = vmul.f32 %v310, 0.03125
  %v327 = vmul.f32 %v311, 0.03125
  %v328 = vmul.f32 %v312, 0.03125
  %v329 = vmul.f32 %v313, 0.03125
  %v330 = vmul.f32 %v314, 0.03125
  %v331 = vmul.f32 %v315, 0.03125
  %v332 = vmul.f32 %v316, 0.03125
  %v333 = vmul.f32 %v317, 0.03125
  %v334 = vsub.f32 %v240, %v318
  %v335 = vsub.f32 %v243, %v319
  %v336 = vsub.f32 %v248, %v320
  %v337 = vsub.f32 %v251, %v321
  %v338 = vsub.f32 %v256, %v322
  %v339 = vsub.f32 %v259, %v323
  %v340 = vsub.f32 %v264, %v324
  %v341 = vsub.f32 %v267, %v325
  %v342 = vsub.f32 %v272, %v326
  %v343 = vsub.f32 %v275, %v327
  %v344 = vsub.f32 %v280, %v328
  %v345 = vsub.f32 %v283, %v329
  %v346 = vsub.f32 %v288, %v330
  %v347 = vsub.f32 %v291, %v331
  %v348 = vsub.f32 %v296, %v332
  %v349 = vsub.f32 %v299, %v333
  %v350 = vmul.f32 %v334, 1.442695
  %v351 = vpow.pop %v350
  %v352 = vmul.f32 %v335, 1.442695
  %v353 = vpow.pop %v352
  %v354 = vmul.f32 %v336, 1.442695
  %v355 = vpow.pop %v354
  %v356 = vmul.f32 %v337, 1.442695
  %v357 = vpow.pop %v356
  %v358 = vmul.f32 %v338, 1.442695
  %v359 = vpow.pop %v358
  %v360 = vmul.f32 %v339, 1.442695
  %v361 = vpow.pop %v360
  %v362 = vmul.f32 %v340, 1.442695
  %v363 = vpow.pop %v362
  %v364 = vmul.f32 %v341, 1.442695
  %v365 = vpow.pop %v364
  %v366 = vmul.f32 %v342, 1.442695
  %v367 = vpow.pop %v366
  %v368 = vmul.f32 %v343, 1.442695
  %v369 = vpow.pop %v368
  %v370 = vmul.f32 %v344, 1.442695
  %v371 = vpow.pop %v370
  %v372 = vmul.f32 %v345, 1.442695
  %v373 = vpow.pop %v372
  %v374 = vmul.f32 %v346, 1.442695
  %v375 = vpow.pop %v374
  %v376 = vmul.f32 %v347, 1.442695
  %v377 = vpow.pop %v376
  %v378 = vmul.f32 %v348, 1.442695
  %v379 = vpow.pop %v378
  %v380 = vmul.f32 %v349, 1.442695
  %v381 = vpow.pop %v380
  %v382 = vpack.c.bf16 %v353, %v351
  %v383 = vpack.c.bf16 %v357, %v355
  %v384 = vpack.c.bf16 %v361, %v359
  %v385 = vpack.c.bf16 %v365, %v363
  %v386 = vpack.c.bf16 %v369, %v367
  %v387 = vpack.c.bf16 %v373, %v371
  %v388 = vpack.c.bf16 %v377, %v375
  %v389 = vpack.c.bf16 %v381, %v379
  %v390 = vld [vmem:[%s3] sm:$0xf]
  %v391 = vld [vmem:[%s3 + $0x4] sm:$0xf]
  %v392 = vld [vmem:[%s3 + $0x8] sm:$0xf]
  %v393 = vld [vmem:[%s3 + $0xc] sm:$0xf]
  %v394 = vld [vmem:[%s3 + $0x10] sm:$0xf]
  %v395 = vld [vmem:[%s3 + $0x14] sm:$0xf]
  %v396 = vld [vmem:[%s3 + $0x18] sm:$0xf]
  %v397 = vld [vmem:[%s3 + $0x1c] sm:$0xf]
  %v398 = vld [vmem:[%s3 + $0x20] sm:$0xf]
  %v399 = vld [vmem:[%s3 + $0x24] sm:$0xf]
  %v400 = vld [vmem:[%s3 + $0x28] sm:$0xf]
  %v401 = vld [vmem:[%s3 + $0x2c] sm:$0xf]
  %v402 = vld [vmem:[%s3 + $0x30] sm:$0xf]
  %v403 = vld [vmem:[%s3 + $0x34] sm:$0xf]
  %v404 = vld [vmem:[%s3 + $0x38] sm:$0xf]
  %v405 = vld [vmem:[%s3 + $0x3c] sm:$0xf]
  %v406 = vld [vmem:[%s4] sm:$0x1]
  %v408 = vlaneseq
  %v409 = vshrl.u32 %v408, 7
  %v410 = vsub.s32 0, %v409
  %v411 = vrot.slane %v406, %v410
  %v429 = vunpack.c.l.b16 %v390
  %v430 = vunpack.c.l.b16 %v391
  %v431 = vunpack.c.l.b16 %v392
  %v432 = vunpack.c.l.b16 %v393
  %v433 = vunpack.c.l.b16 %v394
  %v434 = vunpack.c.l.b16 %v395
  %v435 = vunpack.c.l.b16 %v396
  %v436 = vunpack.c.l.b16 %v397
  %v437 = vunpack.c.l.b16 %v398
  %v438 = vunpack.c.l.b16 %v399
  %v439 = vunpack.c.l.b16 %v400
  %v440 = vunpack.c.l.b16 %v401
  %v441 = vunpack.c.l.b16 %v402
  %v442 = vunpack.c.l.b16 %v403
  %v443 = vunpack.c.l.b16 %v404
  %v444 = vunpack.c.l.b16 %v405
  %v445 = vpack.c.b16 %v430, %v429
  %v446 = vpack.c.b16 %v432, %v431
  %v447 = vpack.c.b16 %v434, %v433
  %v448 = vpack.c.b16 %v436, %v435
  %v449 = vpack.c.b16 %v438, %v437
  %v450 = vpack.c.b16 %v440, %v439
  %v451 = vpack.c.b16 %v442, %v441
  %v452 = vpack.c.b16 %v444, %v443
  %461 = vmatprep.subr.bf16.mxu0 0
  %462 = vmatpush1.bf16.msra.mxu0 %v445
  %463 = vmatprep.subr.bf16.mxu0 0
  %464 = vmatpush1.bf16.msra.mxu0 %v446
  %465 = vmatprep.subr.bf16.mxu0 0
  %466 = vmatpush1.bf16.msra.mxu0 %v447
  %467 = vmatprep.subr.bf16.mxu0 0
  %468 = vmatpush1.bf16.msra.mxu0 %v448
  %469 = vmatprep.subr.bf16.mxu0 0
  %470 = vmatpush1.bf16.msra.mxu0 %v449
  %471 = vmatprep.subr.bf16.mxu0 0
  %472 = vmatpush1.bf16.msra.mxu0 %v450
  %473 = vmatprep.subr.bf16.mxu0 0
  %474 = vmatpush1.bf16.msra.mxu0 %v451
  %475 = vmatprep.subr.bf16.mxu0 0
  %476 = vmatpush1.bf16.msra.mxu0 %v452
  %477 = vmatprep.subr.bf16.mxu0 0
  %478 = vmatpush1.bf16.msra.mxu0 0
  %479 = vmatprep.subr.bf16.mxu0 0
  %480 = vmatpush1.bf16.msra.mxu0 0
  %481 = vmatprep.subr.bf16.mxu0 0
  %482 = vmatpush1.bf16.msra.mxu0 0
  %483 = vmatprep.subr.bf16.mxu0 0
  %484 = vmatpush1.bf16.msra.mxu0 0
  %485 = vmatprep.subr.bf16.mxu0 0
  %486 = vmatpush1.bf16.msra.mxu0 0
  %487 = vmatprep.subr.bf16.mxu0 0
  %488 = vmatpush1.bf16.msra.mxu0 0
  %489 = vmatprep.subr.bf16.mxu0 0
  %490 = vmatpush1.bf16.msra.mxu0 0
  %491 = vmatprep.subr.bf16.mxu0 0
  %492 = vmatpush1.bf16.msra.mxu0 0
  %493 = vmatprep.mubr.bf16.mxu0 0
  %494 = vmatmul.mubr.bf16.gmra.mrb[0].mxu0 %v382
  %v495 = vpop.f32.mrb[0].mxu0
  %v496 = vadd.f32 %v411, %v495
  %v497 = vpop.f32.mrb[0].mxu0
  %v498 = vpop.f32.mrb[0].mxu0
  %v499 = vadd.f32 %v411, %v498
  %v500 = vpop.f32.mrb[0].mxu0
  %501 = vmatprep.mubr.bf16.mxu0 0
  %502 = vmatmul.mubr.bf16.gmra.mrb[0].mxu0 %v383
  %v503 = vpop.f32.mrb[0].mxu0
  %v504 = vadd.f32 %v411, %v503
  %v505 = vpop.f32.mrb[0].mxu0
  %v506 = vpop.f32.mrb[0].mxu0
  %v507 = vadd.f32 %v411, %v506
  %v508 = vpop.f32.mrb[0].mxu0
  %509 = vmatprep.mubr.bf16.mxu0 0
  %510 = vmatmul.mubr.bf16.gmra.mrb[0].mxu0 %v384
  %v511 = vpop.f32.mrb[0].mxu0
  %v512 = vadd.f32 %v411, %v511
  %v513 = vpop.f32.mrb[0].mxu0
  %v514 = vpop.f32.mrb[0].mxu0
  %v515 = vadd.f32 %v411, %v514
  %v516 = vpop.f32.mrb[0].mxu0
  %517 = vmatprep.mubr.bf16.mxu0 0
  %518 = vmatmul.mubr.bf16.gmra.mrb[0].mxu0 %v385
  %v519 = vpop.f32.mrb[0].mxu0
  %v520 = vadd.f32 %v411, %v519
  %v521 = vpop.f32.mrb[0].mxu0
  %v522 = vpop.f32.mrb[0].mxu0
  %v523 = vadd.f32 %v411, %v522
  %v524 = vpop.f32.mrb[0].mxu0
  %525 = vmatprep.mubr.bf16.mxu0 0
  %526 = vmatmul.mubr.bf16.gmra.mrb[0].mxu0 %v386
  %v527 = vpop.f32.mrb[0].mxu0
  %v528 = vadd.f32 %v411, %v527
  %v529 = vpop.f32.mrb[0].mxu0
  %v530 = vpop.f32.mrb[0].mxu0
  %v531 = vadd.f32 %v411, %v530
  %v532 = vpop.f32.mrb[0].mxu0
  %533 = vmatprep.mubr.bf16.mxu0 0
  %534 = vmatmul.mubr.bf16.gmra.mrb[0].mxu0 %v387
  %v535 = vpop.f32.mrb[0].mxu0
  %v536 = vadd.f32 %v411, %v535
  %v537 = vpop.f32.mrb[0].mxu0
  %v538 = vpop.f32.mrb[0].mxu0
  %v539 = vadd.f32 %v411, %v538
  %v540 = vpop.f32.mrb[0].mxu0
  %541 = vmatprep.mubr.bf16.mxu0 0
  %542 = vmatmul.mubr.bf16.gmra.mrb[0].mxu0 %v388
  %v543 = vpop.f32.mrb[0].mxu0
  %v544 = vadd.f32 %v411, %v543
  %v545 = vpop.f32.mrb[0].mxu0
  %v546 = vpop.f32.mrb[0].mxu0
  %v547 = vadd.f32 %v411, %v546
  %v548 = vpop.f32.mrb[0].mxu0
  %549 = vmatprep.mubr.bf16.mxu0 0
  %550 = vmatmul.mubr.bf16.gmra.mrb[0].mxu0 %v389
  %v551 = vpop.f32.mrb[0].mxu0
  %v552 = vadd.f32 %v411, %v551
  %v553 = vpop.f32.mrb[0].mxu0
  %v554 = vpop.f32.mrb[0].mxu0
  %v555 = vadd.f32 %v411, %v554
  %v556 = vpop.f32.mrb[0].mxu0
  %557 = vdwg.mxu0
  %vm558 = vcmask 64512
  %559 = vst.msk [vmem:[%s5] sm:$0xff] %vm558, %v496
  %560 = vst.msk [vmem:[%s5 + $0x8] sm:$0xff] %vm558, %v499
  %561 = vst.msk [vmem:[%s5 + $0x10] sm:$0xff] %vm558, %v504
  %562 = vst.msk [vmem:[%s5 + $0x18] sm:$0xff] %vm558, %v507
  %563 = vst.msk [vmem:[%s5 + $0x20] sm:$0xff] %vm558, %v512
  %564 = vst.msk [vmem:[%s5 + $0x28] sm:$0xff] %vm558, %v515
  %565 = vst.msk [vmem:[%s5 + $0x30] sm:$0xff] %vm558, %v520
  %566 = vst.msk [vmem:[%s5 + $0x38] sm:$0xff] %vm558, %v523
  %567 = vst.msk [vmem:[%s5 + $0x40] sm:$0xff] %vm558, %v528
  %568 = vst.msk [vmem:[%s5 + $0x48] sm:$0xff] %vm558, %v531
  %569 = vst.msk [vmem:[%s5 + $0x50] sm:$0xff] %vm558, %v536
  %570 = vst.msk [vmem:[%s5 + $0x58] sm:$0xff] %vm558, %v539
  %571 = vst.msk [vmem:[%s5 + $0x60] sm:$0xff] %vm558, %v544
  %572 = vst.msk [vmem:[%s5 + $0x68] sm:$0xff] %vm558, %v547
  %573 = vst.msk [vmem:[%s5 + $0x70] sm:$0xff] %vm558, %v552
  %574 = vst.msk [vmem:[%s5 + $0x78] sm:$0xff] %vm558, %v555
  // Predicated region
  $region22: #{tpu_custom_call.1} parent=0 // pred_check
    _
  $region23: #{tpu_custom_call.1} parent=0 // pred_check_branch
    %576 = sbr.rel (0) target = $region25
  $region24: #{tpu_custom_call.1} parent=0 // pred_region
    _
  $region25: #{tpu_custom_call.1} parent=0 // pred_fallthru
    _
  // Predicated region
  $region26: #{tpu_custom_call.1} parent=0 // pred_check
    _
  $region27: #{tpu_custom_call.1} parent=0 // pred_check_branch
    %578 = sbr.rel (0) target = $region29
  $region28: #{tpu_custom_call.1} parent=0 // pred_region
    _
  $region29: #{tpu_custom_call.1} parent=0 // pred_fallthru
    _

</llo_original>
